<compile_context>
chip_gen: v7x
topology: tpu7x:2x2x1
jax: 0.10.0
libtpu: 0.0.40
codegen_flags: <defaults>
</compile_context>

<pallas_src>
import functools

import jax
import jax.numpy as jnp
import numpy as np
from jax.experimental import pallas as pl
from jax.experimental.pallas import tpu as pltpu

HIDDEN = 64
OUT_PAD = 128          # lane-dense output slab width (multiple of 128)
PAD_NEG = -1e30        # padded-lane logit bias -> exp() == 0 -> prob == 0


def _cdiv(a, b):
    return -(-a // b)


def _round_up(x, m):
    return ((x + m - 1) // m) * m


def _choose_tb(B, target=1024):
    """Batch tile: near-`target` rows, minimal padding waste, and (for v7x)
    at least 2 grid steps so the 'parallel' axis shards across both TCs."""
    steps = _cdiv(B, target)
    if steps < 2 and B >= 16:
        steps = 2
    return _round_up(_cdiv(B, steps), 8)


def softmax_actor_kernel(state_ref, w1_ref, b1_ref, w2_ref, b2_ref,
                         wh_ref, bh_ref, g_ref, out_ref):
    f32 = jnp.float32
    bf16 = jnp.bfloat16
    # fc1 -> tanh   (bf16 MXU operands, f32 accumulation & activation math)
    h = jnp.tanh(jnp.dot(state_ref[...].astype(bf16), w1_ref[...],
                         preferred_element_type=f32) + b1_ref[...])
    # fc2 -> tanh
    h = jnp.tanh(jnp.dot(h.astype(bf16), w2_ref[...],
                         preferred_element_type=f32) + b2_ref[...])
    # all action heads fused into one lane-dense matmul; bh carries -1e30 on
    # the padded lanes so they never win the max and their probs are exactly 0
    logits = jnp.dot(h.astype(bf16), wh_ref[...],
                     preferred_element_type=f32) + bh_ref[...]
    # Per-head softmax on the packed lanes: one shift (row max over real
    # lanes), one exp pass, per-group denominators via the block-diagonal 0/1
    # matrix G (exact in bf16), one approx reciprocal on the EUP.
    m = jnp.max(logits, axis=1, keepdims=True)            # one XLU reduce
    e = jnp.exp(logits - m)                                # one EUP pass
    denom = jnp.dot(e.astype(bf16), g_ref[...], preferred_element_type=f32)
    denom = jnp.maximum(denom, 1e-30)      # no Inf/NaN even if a group underflows
    out_ref[...] = (e * pl.reciprocal(denom, approx=True)).astype(out_ref.dtype)


def softmax_actor_forward(state, params, action_num, *, tb=None,
                          out_dtype=jnp.float32, compact=True):
    B, state_dim = state.shape
    action_dim = len(action_num)
    total_out = int(sum(action_num))
    a_max = int(max(action_num))

    if tb is None:
        tb = _choose_tb(B)
    tb = min(tb, _round_up(B, 8))
    b_pad = _round_up(B, tb)
    if b_pad != B:
        state = jnp.pad(state, ((0, b_pad - B), (0, 0)))

    grid = (b_pad // tb,)
    const = lambda i: (0, 0)          # weights/biases/G resident across the grid

    cost = pl.CostEstimate(
        flops=2 * b_pad * (state_dim * HIDDEN + HIDDEN * HIDDEN
                           + HIDDEN * OUT_PAD + OUT_PAD * OUT_PAD),
        transcendentals=b_pad * (2 * HIDDEN + 2 * OUT_PAD),
        bytes_accessed=(b_pad * state_dim * 4
                        + b_pad * OUT_PAD * jnp.dtype(out_dtype).itemsize
                        + (state_dim * HIDDEN + HIDDEN * HIDDEN
                           + HIDDEN * OUT_PAD + OUT_PAD * OUT_PAD) * 2
                        + (2 * HIDDEN + OUT_PAD) * 4),
    )

    out = pl.pallas_call(
        softmax_actor_kernel,
        out_shape=jax.ShapeDtypeStruct((b_pad, OUT_PAD), out_dtype),
        grid=grid,
        in_specs=[
            pl.BlockSpec((tb, state_dim), lambda i: (i, 0)),
            pl.BlockSpec((state_dim, HIDDEN), const),
            pl.BlockSpec((1, HIDDEN), const),
            pl.BlockSpec((HIDDEN, HIDDEN), const),
            pl.BlockSpec((1, HIDDEN), const),
            pl.BlockSpec((HIDDEN, OUT_PAD), const),
            pl.BlockSpec((1, OUT_PAD), const),
            pl.BlockSpec((OUT_PAD, OUT_PAD), const),
        ],
        out_specs=pl.BlockSpec((tb, OUT_PAD), lambda i: (i, 0)),
        compiler_params=pltpu.CompilerParams(
            dimension_semantics=("parallel",)),   # shard batch across v7x TCs
        cost_estimate=cost,
    )(state, params["w1"], params["b1"], params["w2"], params["b2"],
      params["wh"], params["bh"], params["g"])

    if not compact:
        # Padded (b_pad, OUT_PAD) slab: lanes 0:total_out are the packed head
        # probabilities; index lazily / fuse in the consumer to avoid an extra
        # HBM compaction pass (the kernel is writeback-dominated).
        return out

    # pad_sequence semantics: equal-size heads reduce to a reshape.
    # TODO(synk): for ragged action_num, scatter the packed columns into the
    #             zero-padded [B, action_dim, a_max] layout in the wrapper.
    assert all(n == action_num[0] for n in action_num), \
        "compact output path assumes equal-size action heads"
    packed = out[:B, :total_out] if b_pad != B else out[:, :total_out]
    return packed.reshape(B, action_dim, a_max)


def init_params(key, state_dim, action_num):
    """Orthogonal init matching the PyTorch module (gain 1.0 for fc1/fc2,
    gain 0.01 for the action heads, zero biases). Matmul operands (w1, w2,
    wh, G) are stored bf16 for the MXU; biases stay f32 (VPU adds)."""
    ks = jax.random.split(key, 2 + len(action_num))
    orth = jax.nn.initializers.orthogonal

    # fused head weights, lane-padded to OUT_PAD
    wh = np.zeros((HIDDEN, OUT_PAD), np.float32)
    off = 0
    for i, n in enumerate(action_num):
        wh[:, off:off + n] = np.asarray(orth(scale=0.01)(ks[2 + i], (HIDDEN, n)))
        off += n

    # packed head biases: real lanes 0 (module init), padded lanes -1e30 so
    # padded logits exp() to exactly 0 (no in-kernel mask needed)
    bh = np.zeros((1, OUT_PAD), np.float32)
    bh[:, off:] = PAD_NEG

    # block-diagonal group-sum matrix (0/1, exact in bf16); identity on the
    # padded lanes keeps their denominator well-defined (clamped anyway)
    g = np.zeros((OUT_PAD, OUT_PAD), np.float32)
    o = 0
    for n in action_num:
        g[o:o + n, o:o + n] = 1.0
        o += n
    for k in range(o, OUT_PAD):
        g[k, k] = 1.0

    return {
        "w1": orth(scale=1.0)(ks[0], (state_dim, HIDDEN)).astype(jnp.bfloat16),
        "b1": jnp.zeros((1, HIDDEN), jnp.float32),
        "w2": orth(scale=1.0)(ks[1], (HIDDEN, HIDDEN)).astype(jnp.bfloat16),
        "b2": jnp.zeros((1, HIDDEN), jnp.float32),
        "wh": jnp.asarray(wh, jnp.bfloat16),
        "bh": jnp.asarray(bh, jnp.float32),
        "g": jnp.asarray(g, jnp.bfloat16),
    }


if __name__ == "__main__":
    key = jax.random.PRNGKey(0)
    k_param, k_state = jax.random.split(key)

    batch = 8
    state_dim = 8
    action_num = [3, 3, 3, 3]          # module default -> action_dim = 4 heads
    action_dim = len(action_num)

    params = init_params(k_param, state_dim, action_num)
    state = jax.random.normal(k_state, (batch, state_dim), jnp.float32)

    fwd = jax.jit(functools.partial(softmax_actor_forward, action_num=action_num))
    probs = fwd(state, params)
    jax.block_until_ready(probs)

    assert probs.shape == (batch, action_dim, max(action_num))
    p = np.asarray(probs)
    assert np.all(p >= 0.0)
    assert np.all(np.isfinite(p))
    assert np.allclose(p.sum(axis=2), 1.0, atol=1e-2)   # each head is a softmax
    print("KERNEL_OK")
</pallas_src>

<mosaic_0001>
module attributes {stable_mosaic.version = 11 : i64} {
  func.func @softmax_actor_kernel(%arg0: i32, %arg1: memref<8x8xf32, #tpu.memory_space<vmem>>, %arg2: memref<8x64xbf16, #tpu.memory_space<vmem>>, %arg3: memref<1x64xf32, #tpu.memory_space<vmem>>, %arg4: memref<64x64xbf16, #tpu.memory_space<vmem>>, %arg5: memref<1x64xf32, #tpu.memory_space<vmem>>, %arg6: memref<64x128xbf16, #tpu.memory_space<vmem>>, %arg7: memref<1x128xf32, #tpu.memory_space<vmem>>, %arg8: memref<128x128xbf16, #tpu.memory_space<vmem>>, %arg9: memref<8x128xf32, #tpu.memory_space<vmem>>) attributes {dimension_semantics = [#tpu.dimension_semantics<parallel>], iteration_bounds = array<i64: 1>, scalar_prefetch = 0 : i64, scratch_operands = 0 : i64, tpu.core_type = #tpu.core_type<tc>, window_params = [{transform_indices = @transform_0, window_bounds = array<i64: 8, 8>}, {pipeline_mode = #tpu.pipeline_mode<synchronous>, transform_indices = @transform_1, window_bounds = array<i64: 8, 64>}, {pipeline_mode = #tpu.pipeline_mode<synchronous>, transform_indices = @transform_2, window_bounds = array<i64: 1, 64>}, {pipeline_mode = #tpu.pipeline_mode<synchronous>, transform_indices = @transform_3, window_bounds = array<i64: 64, 64>}, {pipeline_mode = #tpu.pipeline_mode<synchronous>, transform_indices = @transform_4, window_bounds = array<i64: 1, 64>}, {pipeline_mode = #tpu.pipeline_mode<synchronous>, transform_indices = @transform_5, window_bounds = array<i64: 64, 128>}, {pipeline_mode = #tpu.pipeline_mode<synchronous>, transform_indices = @transform_6, window_bounds = array<i64: 1, 128>}, {pipeline_mode = #tpu.pipeline_mode<synchronous>, transform_indices = @transform_7, window_bounds = array<i64: 128, 128>}, {transform_indices = @transform_8, window_bounds = array<i64: 8, 128>}]} {
    %c0 = arith.constant 0 : index
    %c0_0 = arith.constant 0 : index
    %0 = vector.load %arg1[%c0, %c0_0] : memref<8x8xf32, #tpu.memory_space<vmem>>, vector<8x8xf32>
    %1 = arith.truncf %0 : vector<8x8xf32> to vector<8x8xbf16>
    %c0_1 = arith.constant 0 : index
    %c0_2 = arith.constant 0 : index
    %2 = vector.load %arg2[%c0_1, %c0_2] : memref<8x64xbf16, #tpu.memory_space<vmem>>, vector<8x64xbf16>
    %cst = arith.constant dense<0.000000e+00> : vector<8x64xf32>
    %3 = tpu.matmul %1, %2, %cst {dimension_numbers = #tpu.dot_dimension_numbers<[1], [0], [0], [1], [0, 0, 1, 1], [], []>} : vector<8x8xbf16>, vector<8x64xbf16>, vector<8x64xf32> -> vector<8x64xf32>
    %c0_3 = arith.constant 0 : index
    %c0_4 = arith.constant 0 : index
    %4 = vector.load %arg3[%c0_3, %c0_4] : memref<1x64xf32, #tpu.memory_space<vmem>>, vector<1x64xf32>
    %5 = vector.broadcast %4 : vector<1x64xf32> to vector<8x64xf32>
    %6 = arith.addf %3, %5 : vector<8x64xf32>
    %7 = math.tanh %6 : vector<8x64xf32>
    %8 = arith.truncf %7 : vector<8x64xf32> to vector<8x64xbf16>
    %c0_5 = arith.constant 0 : index
    %c0_6 = arith.constant 0 : index
    %9 = vector.load %arg4[%c0_5, %c0_6] : memref<64x64xbf16, #tpu.memory_space<vmem>>, vector<64x64xbf16>
    %cst_7 = arith.constant dense<0.000000e+00> : vector<8x64xf32>
    %10 = tpu.matmul %8, %9, %cst_7 {dimension_numbers = #tpu.dot_dimension_numbers<[1], [0], [0], [1], [0, 0, 1, 1], [], []>} : vector<8x64xbf16>, vector<64x64xbf16>, vector<8x64xf32> -> vector<8x64xf32>
    %c0_8 = arith.constant 0 : index
    %c0_9 = arith.constant 0 : index
    %11 = vector.load %arg5[%c0_8, %c0_9] : memref<1x64xf32, #tpu.memory_space<vmem>>, vector<1x64xf32>
    %12 = vector.broadcast %11 : vector<1x64xf32> to vector<8x64xf32>
    %13 = arith.addf %10, %12 : vector<8x64xf32>
    %14 = math.tanh %13 : vector<8x64xf32>
    %15 = arith.truncf %14 : vector<8x64xf32> to vector<8x64xbf16>
    %c0_10 = arith.constant 0 : index
    %c0_11 = arith.constant 0 : index
    %16 = vector.load %arg6[%c0_10, %c0_11] : memref<64x128xbf16, #tpu.memory_space<vmem>>, vector<64x128xbf16>
    %cst_12 = arith.constant dense<0.000000e+00> : vector<8x128xf32>
    %17 = tpu.matmul %15, %16, %cst_12 {dimension_numbers = #tpu.dot_dimension_numbers<[1], [0], [0], [1], [0, 0, 1, 1], [], []>} : vector<8x64xbf16>, vector<64x128xbf16>, vector<8x128xf32> -> vector<8x128xf32>
    %c0_13 = arith.constant 0 : index
    %c0_14 = arith.constant 0 : index
    %18 = vector.load %arg7[%c0_13, %c0_14] : memref<1x128xf32, #tpu.memory_space<vmem>>, vector<1x128xf32>
    %19 = vector.broadcast %18 : vector<1x128xf32> to vector<8x128xf32>
    %20 = arith.addf %17, %19 : vector<8x128xf32>
    %cst_15 = arith.constant dense<0xFF800000> : vector<8xf32>
    %21 = vector.multi_reduction <maximumf>, %20, %cst_15 [1] : vector<8x128xf32> to vector<8xf32>
    %22 = vector.shape_cast %21 : vector<8xf32> to vector<8x1xf32>
    %23 = vector.broadcast %22 : vector<8x1xf32> to vector<8x128xf32>
    %24 = arith.subf %20, %23 : vector<8x128xf32>
    %25 = math.exp %24 : vector<8x128xf32>
    %26 = arith.truncf %25 : vector<8x128xf32> to vector<8x128xbf16>
    %c0_16 = arith.constant 0 : index
    %c0_17 = arith.constant 0 : index
    %27 = vector.load %arg8[%c0_16, %c0_17] : memref<128x128xbf16, #tpu.memory_space<vmem>>, vector<128x128xbf16>
    %cst_18 = arith.constant dense<0.000000e+00> : vector<8x128xf32>
    %28 = tpu.matmul %26, %27, %cst_18 {dimension_numbers = #tpu.dot_dimension_numbers<[1], [0], [0], [1], [0, 0, 1, 1], [], []>} : vector<8x128xbf16>, vector<128x128xbf16>, vector<8x128xf32> -> vector<8x128xf32>
    %cst_19 = arith.constant 1.000000e-30 : f32
    %29 = vector.broadcast %cst_19 : f32 to vector<8x128xf32>
    %30 = arith.maximumf %28, %29 : vector<8x128xf32>
    %31 = tpu.reciprocal %30 {approx = true} : vector<8x128xf32> -> vector<8x128xf32>
    %32 = arith.mulf %25, %31 : vector<8x128xf32>
    %c0_20 = arith.constant 0 : index
    %c0_21 = arith.constant 0 : index
    %33 = vector.load %arg9[%c0_20, %c0_21] : memref<8x128xf32, #tpu.memory_space<vmem>>, vector<8x128xf32>
    tpu.vector_store %arg9[%c0_20, %c0_21], %32 {strides = array<i32>} : memref<8x128xf32, #tpu.memory_space<vmem>>, vector<8x128xf32>,
    return
  }
  func.func @transform_0(%arg0: i32) -> (i32, i32) {
    %c0_i32 = arith.constant 0 : i32
    %c0_i32_0 = arith.constant 0 : i32
    return %arg0, %c0_i32 : i32, i32
  }
  func.func @transform_1(%arg0: i32) -> (i32, i32) {
    %c0_i32 = arith.constant 0 : i32
    %c0_i32_0 = arith.constant 0 : i32
    %c0_i32_1 = arith.constant 0 : i32
    return %c0_i32, %c0_i32_0 : i32, i32
  }
  func.func @transform_2(%arg0: i32) -> (i32, i32) {
    %c0_i32 = arith.constant 0 : i32
    %c0_i32_0 = arith.constant 0 : i32
    %c0_i32_1 = arith.constant 0 : i32
    return %c0_i32, %c0_i32_0 : i32, i32
  }
  func.func @transform_3(%arg0: i32) -> (i32, i32) {
    %c0_i32 = arith.constant 0 : i32
    %c0_i32_0 = arith.constant 0 : i32
    %c0_i32_1 = arith.constant 0 : i32
    return %c0_i32, %c0_i32_0 : i32, i32
  }
  func.func @transform_4(%arg0: i32) -> (i32, i32) {
    %c0_i32 = arith.constant 0 : i32
    %c0_i32_0 = arith.constant 0 : i32
    %c0_i32_1 = arith.constant 0 : i32
    return %c0_i32, %c0_i32_0 : i32, i32
  }
  func.func @transform_5(%arg0: i32) -> (i32, i32) {
    %c0_i32 = arith.constant 0 : i32
    %c0_i32_0 = arith.constant 0 : i32
    %c0_i32_1 = arith.constant 0 : i32
    return %c0_i32, %c0_i32_0 : i32, i32
  }
  func.func @transform_6(%arg0: i32) -> (i32, i32) {
    %c0_i32 = arith.constant 0 : i32
    %c0_i32_0 = arith.constant 0 : i32
    %c0_i32_1 = arith.constant 0 : i32
    return %c0_i32, %c0_i32_0 : i32, i32
  }
  func.func @transform_7(%arg0: i32) -> (i32, i32) {
    %c0_i32 = arith.constant 0 : i32
    %c0_i32_0 = arith.constant 0 : i32
    %c0_i32_1 = arith.constant 0 : i32
    return %c0_i32, %c0_i32_0 : i32, i32
  }
  func.func @transform_8(%arg0: i32) -> (i32, i32) {
    %c0_i32 = arith.constant 0 : i32
    %c0_i32_0 = arith.constant 0 : i32
    return %arg0, %c0_i32 : i32, i32
  }
}

</mosaic_0001>

<llo_original>
// kernel: softmax_actor_forward.1
$region0: #{softmax_actor_forward.1}
  #allocation0 [shape = 'u32[]', space=smem, size = 0x4, offset = 0x4, fixed_abs, tag = 'smem constant byte address 0x4 - core index']
  #allocation1 [shape = 'u32[144,128]{1,0:T(1,128)}', space=vmem, size = 0x12000, scoped, tag = 'internal scratch']
  %s0 = inlined_call_operand.hbm [shape: f32[8,8], index: 0, kind: input, shape index: {}]
  %s1 = inlined_call_operand.vmem [shape: bf16[8,64], index: 1, kind: input, shape index: {}]
  %s2 = inlined_call_operand.vmem [shape: f32[1,64], index: 2, kind: input, shape index: {}]
  %s3 = inlined_call_operand.hbm [shape: bf16[64,64], index: 3, kind: input, shape index: {}]
  %s4 = inlined_call_operand.vmem [shape: f32[1,64], index: 4, kind: input, shape index: {}]
  %s5 = inlined_call_operand.hbm [shape: bf16[64,128], index: 5, kind: input, shape index: {}]
  %s6 = inlined_call_operand.vmem [shape: f32[1,128], index: 6, kind: input, shape index: {}]
  %s7 = inlined_call_operand.hbm [shape: bf16[128,128], index: 7, kind: input, shape index: {}]
  %s8 = inlined_call_operand.vmem [shape: f32[8,128], index: 8, kind: output, shape index: {}]
  %s9 = sld [smem:[#allocation0]]
  $region58: #{softmax_actor_forward.1} parent=0
    _
  %s11 = ssub.s32 1, %s9
  %s12 = scalar_select 0, %s11, %s9
  $region1: #{softmax_actor_forward.1} parent=0
    #allocation2 [shape = 'u8[4096]{0}', space=vmem, size = 0x1000, scoped, tag = 'input window, operand 0, single buffered']
    #allocation3 [shape = 's32[1]{0}', space=sflag, size = 0x4, scoped, tag = 'scoped memory for softmax_actor_forward.1']
    #allocation4 [shape = 'u8[16384]{0}', space=vmem, size = 0x4000, scoped, tag = 'input window, operand 3, single buffered']
    #allocation5 [shape = 's32[1]{0}', space=sflag, size = 0x4, scoped, tag = 'scoped memory for softmax_actor_forward.1']
    #allocation6 [shape = 'u8[16384]{0}', space=vmem, size = 0x4000, scoped, tag = 'input window, operand 5, single buffered']
    #allocation7 [shape = 'u8[32768]{0}', space=vmem, size = 0x8000, scoped, tag = 'input window, operand 7, single buffered']
    #allocation8 [shape = 's32[1]{0}', space=sflag, size = 0x4, scoped, tag = 'scoped memory for softmax_actor_forward.1']
    %13 = vsyncpa [#allocation3], 0
    %14 = vsyncpa [#allocation5], 0
    %15 = vsyncpa [#allocation8], 0
    // Predicated region
    $region2: #{softmax_actor_forward.1} parent=1 // pred_check
      _
    $region3: #{softmax_actor_forward.1} parent=1 // pred_check_branch
      %17 = sbr.rel (0) target = $region5
    $region4: #{softmax_actor_forward.1} parent=1 // pred_region
      %s19 = ssub.s32 128, 128
      %20 = vsyncadd [#allocation3], %s19
      %s22 = sshll.u32 [#allocation2], 4
      %s23 = int_to_ptr.vmem [resolvable:$true] %s22
      %25 = dma.hbm_to_vmem [thread:$0]  %s0, 128, %s23, [#allocation3]
    $region5: #{softmax_actor_forward.1} parent=1 // pred_fallthru
      _
    // Predicated region
    $region6: #{softmax_actor_forward.1} parent=1 // pred_check
      _
    $region7: #{softmax_actor_forward.1} parent=1 // pred_check_branch
      %27 = sbr.rel (0) target = $region9
    $region8: #{softmax_actor_forward.1} parent=1 // pred_region
      _
    $region9: #{softmax_actor_forward.1} parent=1 // pred_fallthru
      _
    // Predicated region
    $region10: #{softmax_actor_forward.1} parent=1 // pred_check
      _
    $region11: #{softmax_actor_forward.1} parent=1 // pred_check_branch
      %29 = sbr.rel (0) target = $region13
    $region12: #{softmax_actor_forward.1} parent=1 // pred_region
      _
    $region13: #{softmax_actor_forward.1} parent=1 // pred_fallthru
      _
    // Predicated region
    $region14: #{softmax_actor_forward.1} parent=1 // pred_check
      _
    $region15: #{softmax_actor_forward.1} parent=1 // pred_check_branch
      %31 = sbr.rel (0) target = $region17
    $region16: #{softmax_actor_forward.1} parent=1 // pred_region
      %s33 = ssub.s32 512, 512
      %34 = vsyncadd [#allocation5], %s33
      %s35 = sshll.u32 [#allocation4], 4
      %s36 = int_to_ptr.vmem [resolvable:$true] %s35
      %41 = dma.hbm_to_vmem [thread:$0]  %s3, 512, %s36, [#allocation5], 64, 64, 4
    $region17: #{softmax_actor_forward.1} parent=1 // pred_fallthru
      _
    // Predicated region
    $region18: #{softmax_actor_forward.1} parent=1 // pred_check
      _
    $region19: #{softmax_actor_forward.1} parent=1 // pred_check_branch
      %43 = sbr.rel (0) target = $region21
    $region20: #{softmax_actor_forward.1} parent=1 // pred_region
      _
    $region21: #{softmax_actor_forward.1} parent=1 // pred_fallthru
      _
    // Predicated region
    $region22: #{softmax_actor_forward.1} parent=1 // pred_check
      _
    $region23: #{softmax_actor_forward.1} parent=1 // pred_check_branch
      %45 = sbr.rel (0) target = $region25
    $region24: #{softmax_actor_forward.1} parent=1 // pred_region
      %s47 = ssub.s32 512, 512
      %48 = vsyncadd [#allocation5], %s47
      %s49 = sshll.u32 [#allocation6], 4
      %s50 = int_to_ptr.vmem [resolvable:$true] %s49
      %55 = dma.hbm_to_vmem [thread:$0]  %s5, 512, %s50, [#allocation5], 64, 64, 4
    $region25: #{softmax_actor_forward.1} parent=1 // pred_fallthru
      _
    // Predicated region
    $region26: #{softmax_actor_forward.1} parent=1 // pred_check
      _
    $region27: #{softmax_actor_forward.1} parent=1 // pred_check_branch
      %57 = sbr.rel (0) target = $region29
    $region28: #{softmax_actor_forward.1} parent=1 // pred_region
      _
    $region29: #{softmax_actor_forward.1} parent=1 // pred_fallthru
      _
    // Predicated region
    $region30: #{softmax_actor_forward.1} parent=1 // pred_check
      _
    $region31: #{softmax_actor_forward.1} parent=1 // pred_check_branch
      %59 = sbr.rel (0) target = $region33
    $region32: #{softmax_actor_forward.1} parent=1 // pred_region
      %s61 = ssub.s32 1024, 1024
      %62 = vsyncadd [#allocation8], %s61
      %s63 = sshll.u32 [#allocation7], 4
      %s64 = int_to_ptr.vmem [resolvable:$true] %s63
      %69 = dma.hbm_to_vmem [thread:$0]  %s7, 1024, %s64, [#allocation8], 64, 64, 4
    $region33: #{softmax_actor_forward.1} parent=1 // pred_fallthru
      _
    // Predicated region
    $region34: #{softmax_actor_forward.1} parent=1 // pred_check
      _
    $region35: #{softmax_actor_forward.1} parent=1 // pred_check_branch
      %71 = sbr.rel (0) target = $region37
    $region36: #{softmax_actor_forward.1} parent=1 // pred_region
      %72 = dma.done [#allocation3], 128
    $region37: #{softmax_actor_forward.1} parent=1 // pred_fallthru
      _
    // Predicated region
    $region38: #{softmax_actor_forward.1} parent=1 // pred_check
      _
    $region39: #{softmax_actor_forward.1} parent=1 // pred_check_branch
      %74 = sbr.rel (0) target = $region41
    $region40: #{softmax_actor_forward.1} parent=1 // pred_region
      %75 = dma.done [#allocation5], 512
    $region41: #{softmax_actor_forward.1} parent=1 // pred_fallthru
      _
    // Predicated region
    $region42: #{softmax_actor_forward.1} parent=1 // pred_check
      _
    $region43: #{softmax_actor_forward.1} parent=1 // pred_check_branch
      %77 = sbr.rel (0) target = $region45
    $region44: #{softmax_actor_forward.1} parent=1 // pred_region
      %78 = dma.done [#allocation5], 512
    $region45: #{softmax_actor_forward.1} parent=1 // pred_fallthru
      _
    // Predicated region
    $region46: #{softmax_actor_forward.1} parent=1 // pred_check
      _
    $region47: #{softmax_actor_forward.1} parent=1 // pred_check_branch
      %80 = sbr.rel (0) target = $region49
    $region48: #{softmax_actor_forward.1} parent=1 // pred_region
      %81 = dma.done [#allocation8], 1024
    $region49: #{softmax_actor_forward.1} parent=1 // pred_fallthru
      _
    %v83 = vld [vmem:[#allocation2] sm:$0xff]
    %v84 = vpack.c.bf16 %v83, %v83
    %v85 = vld [vmem:[%s1] sm:$0xf]
    %v86 = vld [vmem:[%s2] sm:$0x1]
    %v88 = vlaneseq
    %v89 = vshrl.u32 %v88, 7
    %v90 = vsub.s32 0, %v89
    %v91 = vrot.slane %v86, %v90
    %vm93 = vcmask 64512
    %v95 = vsel %vm93, %v84, 0
    %vm97 = vcmask 1043456
    %v99 = vsel %vm97, %v85, 0
    %101 = vmatprep.subr.bf16.mxu0 0
    %102 = vmatpush1.bf16.msra.mxu0 %v99
    %103 = vmatprep.subr.bf16.mxu0 0
    %104 = vmatpush1.bf16.msra.mxu0 0
    %105 = vmatprep.subr.bf16.mxu0 0
    %106 = vmatpush1.bf16.msra.mxu0 0
    %107 = vmatprep.subr.bf16.mxu0 0
    %108 = vmatpush1.bf16.msra.mxu0 0
    %109 = vmatprep.subr.bf16.mxu0 0
    %110 = vmatpush1.bf16.msra.mxu0 0
    %111 = vmatprep.subr.bf16.mxu0 0
    %112 = vmatpush1.bf16.msra.mxu0 0
    %113 = vmatprep.subr.bf16.mxu0 0
    %114 = vmatpush1.bf16.msra.mxu0 0
    %115 = vmatprep.subr.bf16.mxu0 0
    %116 = vmatpush1.bf16.msra.mxu0 0
    %117 = vmatprep.subr.bf16.mxu0 0
    %118 = vmatpush1.bf16.msra.mxu0 0
    %119 = vmatprep.subr.bf16.mxu0 0
    %120 = vmatpush1.bf16.msra.mxu0 0
    %121 = vmatprep.subr.bf16.mxu0 0
    %122 = vmatpush1.bf16.msra.mxu0 0
    %123 = vmatprep.subr.bf16.mxu0 0
    %124 = vmatpush1.bf16.msra.mxu0 0
    %125 = vmatprep.subr.bf16.mxu0 0
    %126 = vmatpush1.bf16.msra.mxu0 0
    %127 = vmatprep.subr.bf16.mxu0 0
    %128 = vmatpush1.bf16.msra.mxu0 0
    %129 = vmatprep.subr.bf16.mxu0 0
    %130 = vmatpush1.bf16.msra.mxu0 0
    %131 = vmatprep.subr.bf16.mxu0 0
    %132 = vmatpush1.bf16.msra.mxu0 0
    %133 = vmatprep.mubr.bf16.mxu0 0
    %134 = vmatmul.mubr.bf16.gmra.mrb[0].mxu0 %v95
    %v135 = vpop.f32.mrb[0].mxu0
    %v136 = vadd.f32 %v91, %v135
    %v137 = vpop.f32.mrb[0].mxu0
    %v138 = vpop.f32.mrb[0].mxu0
    %v139 = vpop.f32.mrb[0].mxu0
    %140 = vdwg.mxu0
    %v141 = vtanh.pop %v136
    %v142 = vpack.c.bf16 %v141, %v141
    %v143 = vld [vmem:[#allocation4] sm:$0xf]
    %v144 = vld [vmem:[#allocation4 + $0x4] sm:$0xf]
    %v145 = vld [vmem:[#allocation4 + $0x8] sm:$0xf]
    %v146 = vld [vmem:[#allocation4 + $0xc] sm:$0xf]
    %v147 = vld [vmem:[#allocation4 + $0x10] sm:$0xf]
    %v148 = vld [vmem:[#allocation4 + $0x14] sm:$0xf]
    %v149 = vld [vmem:[#allocation4 + $0x18] sm:$0xf]
    %v150 = vld [vmem:[#allocation4 + $0x1c] sm:$0xf]
    %v151 = vld [vmem:[%s4] sm:$0x1]
    %v153 = vlaneseq
    %v154 = vshrl.u32 %v153, 7
    %v155 = vsub.s32 0, %v154
    %v156 = vrot.slane %v151, %v155
    %v166 = vunpack.c.l.b16 %v143
    %v167 = vunpack.c.l.b16 %v144
    %v168 = vunpack.c.l.b16 %v145
    %v169 = vunpack.c.l.b16 %v146
    %v170 = vunpack.c.l.b16 %v147
    %v171 = vunpack.c.l.b16 %v148
    %v172 = vunpack.c.l.b16 %v149
    %v173 = vunpack.c.l.b16 %v150
    %v174 = vpack.c.b16 %v167, %v166
    %v175 = vpack.c.b16 %v169, %v168
    %v176 = vpack.c.b16 %v171, %v170
    %v177 = vpack.c.b16 %v173, %v172
    %vm182 = vcmask 523264
    %v184 = vsel %vm182, %v142, 0
    %186 = vmatprep.subr.bf16.mxu0 0
    %187 = vmatpush1.bf16.msra.mxu0 %v174
    %188 = vmatprep.subr.bf16.mxu0 0
    %189 = vmatpush1.bf16.msra.mxu0 %v175
    %190 = vmatprep.subr.bf16.mxu0 0
    %191 = vmatpush1.bf16.msra.mxu0 %v176
    %192 = vmatprep.subr.bf16.mxu0 0
    %193 = vmatpush1.bf16.msra.mxu0 %v177
    %194 = vmatprep.subr.bf16.mxu0 0
    %195 = vmatpush1.bf16.msra.mxu0 0
    %196 = vmatprep.subr.bf16.mxu0 0
    %197 = vmatpush1.bf16.msra.mxu0 0
    %198 = vmatprep.subr.bf16.mxu0 0
    %199 = vmatpush1.bf16.msra.mxu0 0
    %200 = vmatprep.subr.bf16.mxu0 0
    %201 = vmatpush1.bf16.msra.mxu0 0
    %202 = vmatprep.subr.bf16.mxu0 0
    %203 = vmatpush1.bf16.msra.mxu0 0
    %204 = vmatprep.subr.bf16.mxu0 0
    %205 = vmatpush1.bf16.msra.mxu0 0
    %206 = vmatprep.subr.bf16.mxu0 0
    %207 = vmatpush1.bf16.msra.mxu0 0
    %208 = vmatprep.subr.bf16.mxu0 0
    %209 = vmatpush1.bf16.msra.mxu0 0
    %210 = vmatprep.subr.bf16.mxu0 0
    %211 = vmatpush1.bf16.msra.mxu0 0
    %212 = vmatprep.subr.bf16.mxu0 0
    %213 = vmatpush1.bf16.msra.mxu0 0
    %214 = vmatprep.subr.bf16.mxu0 0
    %215 = vmatpush1.bf16.msra.mxu0 0
    %216 = vmatprep.subr.bf16.mxu0 0
    %217 = vmatpush1.bf16.msra.mxu0 0
    %218 = vmatprep.mubr.bf16.mxu0 0
    %219 = vmatmul.mubr.bf16.gmra.mrb[0].mxu0 %v184
    %v220 = vpop.f32.mrb[0].mxu0
    %v221 = vadd.f32 %v156, %v220
    %v222 = vpop.f32.mrb[0].mxu0
    %v223 = vpop.f32.mrb[0].mxu0
    %v224 = vpop.f32.mrb[0].mxu0
    %225 = vdwg.mxu0
    %v226 = vtanh.pop %v221
    %v227 = vpack.c.bf16 %v226, %v226
    %v228 = vld [vmem:[#allocation6] sm:$0xf]
    %v229 = vld [vmem:[#allocation6 + $0x4] sm:$0xf]
    %v230 = vld [vmem:[#allocation6 + $0x8] sm:$0xf]
    %v231 = vld [vmem:[#allocation6 + $0xc] sm:$0xf]
    %v232 = vld [vmem:[#allocation6 + $0x10] sm:$0xf]
    %v233 = vld [vmem:[#allocation6 + $0x14] sm:$0xf]
    %v234 = vld [vmem:[#allocation6 + $0x18] sm:$0xf]
    %v235 = vld [vmem:[#allocation6 + $0x1c] sm:$0xf]
    %v236 = vld [vmem:[%s6] sm:$0x1]
    %v238 = vlaneseq
    %v239 = vshrl.u32 %v238, 7
    %v240 = vsub.s32 0, %v239
    %v241 = vrot.slane %v236, %v240
    %v251 = vunpack.c.l.b16 %v228
    %v252 = vunpack.c.l.b16 %v229
    %v253 = vunpack.c.l.b16 %v230
    %v254 = vunpack.c.l.b16 %v231
    %v255 = vunpack.c.l.b16 %v232
    %v256 = vunpack.c.l.b16 %v233
    %v257 = vunpack.c.l.b16 %v234
    %v258 = vunpack.c.l.b16 %v235
    %v259 = vpack.c.b16 %v252, %v251
    %v260 = vpack.c.b16 %v254, %v253
    %v261 = vpack.c.b16 %v256, %v255
    %v262 = vpack.c.b16 %v258, %v257
    %v268 = vsel %vm182, %v227, 0
    %270 = vmatprep.subr.bf16.mxu0 0
    %271 = vmatpush1.bf16.msra.mxu0 %v259
    %272 = vmatprep.subr.bf16.mxu0 0
    %273 = vmatpush1.bf16.msra.mxu0 %v260
    %274 = vmatprep.subr.bf16.mxu0 0
    %275 = vmatpush1.bf16.msra.mxu0 %v261
    %276 = vmatprep.subr.bf16.mxu0 0
    %277 = vmatpush1.bf16.msra.mxu0 %v262
    %278 = vmatprep.subr.bf16.mxu0 0
    %279 = vmatpush1.bf16.msra.mxu0 0
    %280 = vmatprep.subr.bf16.mxu0 0
    %281 = vmatpush1.bf16.msra.mxu0 0
    %282 = vmatprep.subr.bf16.mxu0 0
    %283 = vmatpush1.bf16.msra.mxu0 0
    %284 = vmatprep.subr.bf16.mxu0 0
    %285 = vmatpush1.bf16.msra.mxu0 0
    %286 = vmatprep.subr.bf16.mxu0 0
    %287 = vmatpush1.bf16.msra.mxu0 0
    %288 = vmatprep.subr.bf16.mxu0 0
    %289 = vmatpush1.bf16.msra.mxu0 0
    %290 = vmatprep.subr.bf16.mxu0 0
    %291 = vmatpush1.bf16.msra.mxu0 0
    %292 = vmatprep.subr.bf16.mxu0 0
    %293 = vmatpush1.bf16.msra.mxu0 0
    %294 = vmatprep.subr.bf16.mxu0 0
    %295 = vmatpush1.bf16.msra.mxu0 0
    %296 = vmatprep.subr.bf16.mxu0 0
    %297 = vmatpush1.bf16.msra.mxu0 0
    %298 = vmatprep.subr.bf16.mxu0 0
    %299 = vmatpush1.bf16.msra.mxu0 0
    %300 = vmatprep.subr.bf16.mxu0 0
    %301 = vmatpush1.bf16.msra.mxu0 0
    %302 = vmatprep.mubr.bf16.mxu0 0
    %303 = vmatmul.mubr.bf16.gmra.mrb[0].mxu0 %v268
    %v304 = vpop.f32.mrb[0].mxu0
    %v305 = vadd.f32 %v241, %v304
    %v306 = vpop.f32.mrb[0].mxu0
    %v307 = vpop.f32.mrb[0].mxu0
    %v308 = vpop.f32.mrb[0].mxu0
    %309 = vdwg.mxu0
    %310 = vmax.xlane.f32.xlu0 %v305
    %v311 = vpop.xlane.xlu0 %310
    %v312 = vsub.f32 %v305, %v311
    %v313 = vmul.f32 %v312, 1.442695
    %v314 = vpow.pop %v313
    %v315 = vpack.c.bf16 %v314, %v314
    %v316 = vld [vmem:[#allocation7] sm:$0xf]
    %v317 = vld [vmem:[#allocation7 + $0x4] sm:$0xf]
    %v318 = vld [vmem:[#allocation7 + $0x8] sm:$0xf]
    %v319 = vld [vmem:[#allocation7 + $0xc] sm:$0xf]
    %v320 = vld [vmem:[#allocation7 + $0x10] sm:$0xf]
    %v321 = vld [vmem:[#allocation7 + $0x14] sm:$0xf]
    %v322 = vld [vmem:[#allocation7 + $0x18] sm:$0xf]
    %v323 = vld [vmem:[#allocation7 + $0x1c] sm:$0xf]
    %v324 = vld [vmem:[#allocation7 + $0x20] sm:$0xf]
    %v325 = vld [vmem:[#allocation7 + $0x24] sm:$0xf]
    %v326 = vld [vmem:[#allocation7 + $0x28] sm:$0xf]
    %v327 = vld [vmem:[#allocation7 + $0x2c] sm:$0xf]
    %v328 = vld [vmem:[#allocation7 + $0x30] sm:$0xf]
    %v329 = vld [vmem:[#allocation7 + $0x34] sm:$0xf]
    %v330 = vld [vmem:[#allocation7 + $0x38] sm:$0xf]
    %v331 = vld [vmem:[#allocation7 + $0x3c] sm:$0xf]
    %v348 = vunpack.c.l.b16 %v316
    %v349 = vunpack.c.l.b16 %v317
    %v350 = vunpack.c.l.b16 %v318
    %v351 = vunpack.c.l.b16 %v319
    %v352 = vunpack.c.l.b16 %v320
    %v353 = vunpack.c.l.b16 %v321
    %v354 = vunpack.c.l.b16 %v322
    %v355 = vunpack.c.l.b16 %v323
    %v356 = vunpack.c.l.b16 %v324
    %v357 = vunpack.c.l.b16 %v325
    %v358 = vunpack.c.l.b16 %v326
    %v359 = vunpack.c.l.b16 %v327
    %v360 = vunpack.c.l.b16 %v328
    %v361 = vunpack.c.l.b16 %v329
    %v362 = vunpack.c.l.b16 %v330
    %v363 = vunpack.c.l.b16 %v331
    %v364 = vpack.c.b16 %v349, %v348
    %v365 = vpack.c.b16 %v351, %v350
    %v366 = vpack.c.b16 %v353, %v352
    %v367 = vpack.c.b16 %v355, %v354
    %v368 = vpack.c.b16 %v357, %v356
    %v369 = vpack.c.b16 %v359, %v358
    %v370 = vpack.c.b16 %v361, %v360
    %v371 = vpack.c.b16 %v363, %v362
    %380 = vmatprep.subr.bf16.mxu0 0
    %381 = vmatpush1.bf16.msra.mxu0 %v364
    %382 = vmatprep.subr.bf16.mxu0 0
    %383 = vmatpush1.bf16.msra.mxu0 %v365
    %384 = vmatprep.subr.bf16.mxu0 0
    %385 = vmatpush1.bf16.msra.mxu0 %v366
    %386 = vmatprep.subr.bf16.mxu0 0
    %387 = vmatpush1.bf16.msra.mxu0 %v367
    %388 = vmatprep.subr.bf16.mxu0 0
    %389 = vmatpush1.bf16.msra.mxu0 %v368
    %390 = vmatprep.subr.bf16.mxu0 0
    %391 = vmatpush1.bf16.msra.mxu0 %v369
    %392 = vmatprep.subr.bf16.mxu0 0
    %393 = vmatpush1.bf16.msra.mxu0 %v370
    %394 = vmatprep.subr.bf16.mxu0 0
    %395 = vmatpush1.bf16.msra.mxu0 %v371
    %396 = vmatprep.subr.bf16.mxu0 0
    %397 = vmatpush1.bf16.msra.mxu0 0
    %398 = vmatprep.subr.bf16.mxu0 0
    %399 = vmatpush1.bf16.msra.mxu0 0
    %400 = vmatprep.subr.bf16.mxu0 0
    %401 = vmatpush1.bf16.msra.mxu0 0
    %402 = vmatprep.subr.bf16.mxu0 0
    %403 = vmatpush1.bf16.msra.mxu0 0
    %404 = vmatprep.subr.bf16.mxu0 0
    %405 = vmatpush1.bf16.msra.mxu0 0
    %406 = vmatprep.subr.bf16.mxu0 0
    %407 = vmatpush1.bf16.msra.mxu0 0
    %408 = vmatprep.subr.bf16.mxu0 0
    %409 = vmatpush1.bf16.msra.mxu0 0
    %410 = vmatprep.subr.bf16.mxu0 0
    %411 = vmatpush1.bf16.msra.mxu0 0
    %412 = vmatprep.mubr.bf16.mxu0 0
    %413 = vmatmul.mubr.bf16.gmra.mrb[0].mxu0 %v315
    %v414 = vpop.f32.mrb[0].mxu0
    %v415 = vadd.f32 0.0, %v414
    %v416 = vpop.f32.mrb[0].mxu0
    %v417 = vpop.f32.mrb[0].mxu0
    %v418 = vpop.f32.mrb[0].mxu0
    %419 = vdwg.mxu0
    %v420 = vmax.f32 %v415, 1e-30
    %v421 = vrcp.pop %v420
    %v422 = vmul.f32 %v314, %v421
    %423 = vst [vmem:[%s8] sm:$0xff] %v422
    // Predicated region
    $region50: #{softmax_actor_forward.1} parent=1 // pred_check
      _
    $region51: #{softmax_actor_forward.1} parent=1 // pred_check_branch
      %425 = sbr.rel (0) target = $region53
    $region52: #{softmax_actor_forward.1} parent=1 // pred_region
      _
    $region53: #{softmax_actor_forward.1} parent=1 // pred_fallthru
      _
    // Predicated region
    $region54: #{softmax_actor_forward.1} parent=1 // pred_check
      _
    $region55: #{softmax_actor_forward.1} parent=1 // pred_check_branch
      %427 = sbr.rel (0) target = $region57
    $region56: #{softmax_actor_forward.1} parent=1 // pred_region
      _
    $region57: #{softmax_actor_forward.1} parent=1 // pred_fallthru
      _
    %428 = vsyncpa [#allocation3], 1
    %429 = vsyncpa [#allocation5], 1
    %430 = vsyncpa [#allocation8], 1

</llo_original>
